<compile_context>
chip_gen: v7x
topology: tpu7x:2x2x1
jax: 0.10.0
libtpu: 0.0.40
codegen_flags: <defaults>
</compile_context>

<pallas_src>
import functools
import math

import jax
import jax.numpy as jnp
from jax.experimental import pallas as pl
from jax.experimental.pallas import tpu as pltpu


def _disc_kernel(hpl_ref, hmi_ref, u_ref, b_ref, out_ref, *, use_mxu):
    """One (batch b, row-tile j) grid step.

    hpl_ref, hmi_ref : (1, tm, n_h) VMEM   streamed node embeddings (native dtype)
    u_ref            : MXU path: (1, n_h, 128) VMEM  u_b broadcast across lanes
                       VPU path: (1, 1, n_h)   VMEM  u_b as an f32 row
    b_ref            : (1,) SMEM            bilinear bias
    out_ref          : (1, 2, tm) VMEM      row 0 = sc1, row 1 = sc2 (lane-dense)
    """
    bias = b_ref[0]
    if use_mxu:
        # Per-row dot on the otherwise-idle MXU: (tm, n_h) @ (n_h, 128) with u_b
        # replicated across all 128 RHS lanes (standard full-lane RHS).  Every result
        # lane holds the same score; take lane 0.  bf16 x bf16 products are exact,
        # accumulation is f32 (preferred_element_type).
        u = u_ref[0]                                                    # (n_h, 128)
        s1 = jnp.dot(hpl_ref[0], u, preferred_element_type=jnp.float32)[:, 0]
        s2 = jnp.dot(hmi_ref[0], u, preferred_element_type=jnp.float32)[:, 0]
    else:
        # Exact-f32 VPU path: elementwise multiply + lane reduce.
        # TODO(synk): for f32 inputs with n_h < 128 this lane-padded reduce is XLU-bound;
        # a packed-lane segmented reduce would recover the HBM roofline (bf16 inputs
        # already take the MXU path above).
        u = u_ref[0].astype(jnp.float32)                                # (1, n_h)
        s1 = jnp.sum(hpl_ref[0].astype(jnp.float32) * u, axis=-1)      # (tm,)
        s2 = jnp.sum(hmi_ref[0].astype(jnp.float32) * u, axis=-1)      # (tm,)
    out_ref[0, 0, :] = s1 + bias
    out_ref[0, 1, :] = s2 + bias


def _summary_projection(c, weight):
    """u_b = W[0] @ c_b  in f32, shape (B, n_h); the bilinear then reduces to h . u_b."""
    n_h = weight.shape[-1]
    B = c.shape[0]
    c32 = c.reshape(B, n_h).astype(jnp.float32)
    w0 = weight.reshape(n_h, n_h).astype(jnp.float32)
    # Tiny (B, n_h) x (n_h, n_h) matmul; HIGHEST keeps it exact-f32 so the algebraic
    # hoisting is numerically transparent.
    return jnp.einsum("bj,ij->bi", c32, w0, precision=jax.lax.Precision.HIGHEST)


def _pick_row_tile(N, n_h, itemsize):
    """Row-tile heuristic: amortize per-step overhead, stay inside VMEM double-buffering,
    and keep >= ~8 row tiles so v7x can shard the grid across its 2 TensorCores."""
    if N <= 128:
        return N                                          # one full-extent tile per batch
    lanes = max(n_h, 128)                                 # VMEM lane padding for n_h < 128
    tm = max(1024, (2 << 20) // max(1, n_h * itemsize))   # >= ~2 MiB of h per stream/step
    tm = min(tm, (16 << 20) // (4 * lanes * itemsize))    # 2 streams x 2 buffers <= ~16 MiB
    tm = min(tm, max(128, -(-N // 8)))                    # keep the grid >= ~8 row tiles
    return max(128, (tm // 128) * 128)


def discriminator_forward(c, h_pl, h_mi, weight, bias,
                          s_bias1=None, s_bias2=None, *,
                          row_tile=None, use_mxu=None):
    """JAX wrapper reproducing Discriminator.forward.

    c      : (B, 1, n_h) (or (B, n_h)) graph summary
    h_pl   : (B, N, n_h) positive node embeddings   (bf16 recommended)
    h_mi   : (B, N, n_h) negative node embeddings
    weight : (1, n_h, n_h) nn.Bilinear weight
    bias   : (1,)          nn.Bilinear bias
    returns logits: (B, 2N, 1)
    """
    B, N, n_h = h_pl.shape
    assert h_mi.shape == h_pl.shape
    assert c.size == B * n_h, "c must hold one (n_h,) summary per graph"

    dtype = jnp.dtype(h_pl.dtype)
    if use_mxu is None:
        use_mxu = dtype == jnp.dtype(jnp.bfloat16)
    itemsize = dtype.itemsize

    if row_tile is None:
        tm = _pick_row_tile(N, n_h, itemsize)
    elif N <= 128:
        tm = min(row_tile, N)
    else:
        tm = max(128, (row_tile // 128) * 128)
    num_row_tiles = pl.cdiv(N, tm)

    # Hoisted bilinear: per-batch vector u_b = W @ c_b (tiny XLA matmul, f32).
    u = _summary_projection(c, weight)                                  # (B, n_h)
    if use_mxu:
        # Full-lane RHS for the in-kernel MXU dot (u replicated across 128 lanes).
        u_in = jnp.broadcast_to(u.astype(dtype)[:, :, None], (B, n_h, 128))
        u_spec = pl.BlockSpec((1, n_h, 128), lambda b, j: (b, 0, 0))
    else:
        u_in = u[:, None, :]                                            # (B, 1, n_h) f32
        u_spec = pl.BlockSpec((1, 1, n_h), lambda b, j: (b, 0, 0))

    b1 = jnp.asarray(bias, jnp.float32).reshape(1)

    h_spec = pl.BlockSpec((1, tm, n_h), lambda b, j: (b, j, 0))
    b_spec = pl.BlockSpec(memory_space=pltpu.MemorySpace.SMEM)
    out_spec = pl.BlockSpec((1, 2, tm), lambda b, j: (b, 0, j))

    cost = pl.CostEstimate(
        flops=4 * B * N * n_h,
        transcendentals=0,
        bytes_accessed=(2 * B * N * n_h * itemsize            # the two h streams
                        + 2 * B * N * 4                       # scores out
                        + int(u_in.size) * jnp.dtype(u_in.dtype).itemsize
                        + 4))

    # VMEM footprint at defaults: 2 streams x 2 pipeline buffers x tm x max(n_h,128)
    # x itemsize <= ~16 MiB (see _pick_row_tile) -- inside the 32 MiB scoped default on
    # all generations, so no explicit vmem_limit_bytes needed.
    out = pl.pallas_call(
        functools.partial(_disc_kernel, use_mxu=use_mxu),
        out_shape=jax.ShapeDtypeStruct((B, 2, N), jnp.float32),
        grid_spec=pltpu.PrefetchScalarGridSpec(
            num_scalar_prefetch=0,
            grid=(B, num_row_tiles),
            in_specs=[h_spec, h_spec, u_spec, b_spec],
            out_specs=out_spec,
        ),
        compiler_params=pltpu.CompilerParams(
            dimension_semantics=("parallel", "parallel")),
        cost_estimate=cost,
    )(h_pl, h_mi, u_in, b1)

    if s_bias1 is None and s_bias2 is None:
        # (B, 2, N) is already the memory layout of torch.cat((sc1, sc2), dim=1).
        return out.reshape(B, 2 * N, 1)

    sc1 = out[:, 0, :, None]                                            # (B, N, 1)
    sc2 = out[:, 1, :, None]
    if s_bias1 is not None:
        sc1 = sc1 + s_bias1
    if s_bias2 is not None:
        sc2 = sc2 + s_bias2
    return jnp.concatenate((sc1, sc2), axis=1)


def init_discriminator_params(key, n_h):
    """Deterministic params matching Discriminator.__init__ / weights_init."""
    # nn.Bilinear(n_h, n_h, 1).weight: (1, n_h, n_h), xavier_uniform_
    # PyTorch fan calc for ndim > 2: fan_in = n_h * n_h, fan_out = 1 * n_h
    fan_in = n_h * n_h
    fan_out = n_h
    bound = math.sqrt(6.0 / (fan_in + fan_out))
    w = jax.random.uniform(key, (1, n_h, n_h), jnp.float32, -bound, bound)
    b = jnp.zeros((1,), jnp.float32)  # bias.data.fill_(0.0)
    return w, b


def _reference_forward(c, h_pl, h_mi, weight, bias, u_override=None):
    """Pure-JAX reference of the PyTorch forward (elementwise + reduce only: exact f32,
    no MXU).  `u_override` pins the hoisted projection (e.g. the bf16-rounded u that the
    kernel actually consumed) so the comparison isolates the kernel itself."""
    B, N, n_h = h_pl.shape
    h1 = h_pl.astype(jnp.float32)
    h2 = h_mi.astype(jnp.float32)
    if u_override is None:
        w0 = weight.reshape(n_h, n_h).astype(jnp.float32)
        c32 = c.reshape(B, n_h).astype(jnp.float32)
        u = jnp.sum(w0[None, :, :] * c32[:, None, :], axis=-1)         # (B, n_h)
    else:
        u = u_override.astype(jnp.float32)
    b0 = jnp.asarray(bias, jnp.float32).reshape(1)[0]
    sc1 = jnp.sum(h1 * u[:, None, :], axis=-1)[..., None] + b0
    sc2 = jnp.sum(h2 * u[:, None, :], axis=-1)[..., None] + b0
    return jnp.concatenate((sc1, sc2), axis=1)


if __name__ == "__main__":
    key = jax.random.PRNGKey(0)
    k_w, k_c, k_pl, k_mi = jax.random.split(key, 4)

    # --- primary small demo (B=2, N=8, n_h=32): f32 inputs, single full-N tile,
    #     exact-f32 VPU path ---
    B, N, n_h = 2, 8, 32
    weight, bias = init_discriminator_params(k_w, n_h)
    c = jax.random.normal(k_c, (B, 1, n_h), jnp.float32)
    h_pl = jax.random.normal(k_pl, (B, N, n_h), jnp.float32)
    h_mi = jax.random.normal(k_mi, (B, N, n_h), jnp.float32)

    logits = jax.block_until_ready(discriminator_forward(c, h_pl, h_mi, weight, bias))
    ref = _reference_forward(c, h_pl, h_mi, weight, bias)
    assert logits.shape == (B, 2 * N, 1), logits.shape
    assert jnp.allclose(logits, ref, atol=1e-4, rtol=1e-4), "mismatch vs reference (f32)"

    # --- second demo: bf16 streaming (MXU path) + multi-tile grid with ragged edge ---
    N2 = 200
    c2 = jax.random.normal(jax.random.fold_in(k_c, 1), (B, 1, n_h), jnp.float32)
    h_pl2 = jax.random.normal(jax.random.fold_in(k_pl, 1), (B, N2, n_h),
                              jnp.float32).astype(jnp.bfloat16)
    h_mi2 = jax.random.normal(jax.random.fold_in(k_mi, 1), (B, N2, n_h),
                              jnp.float32).astype(jnp.bfloat16)

    logits2 = jax.block_until_ready(discriminator_forward(c2, h_pl2, h_mi2, weight, bias))
    u2 = _summary_projection(c2, weight).astype(jnp.bfloat16)   # same u the kernel used
    ref2 = _reference_forward(c2, h_pl2, h_mi2, weight, bias, u_override=u2)
    assert logits2.shape == (B, 2 * N2, 1), logits2.shape
    assert jnp.allclose(logits2, ref2, atol=1e-2, rtol=1e-2), "mismatch vs reference (bf16)"

    print("KERNEL_OK")
</pallas_src>

<mosaic_0001>
module attributes {stable_mosaic.version = 11 : i64} {
  func.func @_disc_kernel(%arg0: i32, %arg1: i32, %arg2: memref<1x8x32xf32, #tpu.memory_space<vmem>>, %arg3: memref<1x8x32xf32, #tpu.memory_space<vmem>>, %arg4: memref<1x1x32xf32, #tpu.memory_space<vmem>>, %arg5: memref<1xf32, #tpu.memory_space<smem>>, %arg6: memref<1x2x8xf32, #tpu.memory_space<vmem>>) attributes {dimension_semantics = [#tpu.dimension_semantics<parallel>, #tpu.dimension_semantics<parallel>], iteration_bounds = array<i64: 2, 1>, scalar_prefetch = 0 : i64, scratch_operands = 0 : i64, tpu.core_type = #tpu.core_type<tc>, window_params = [{transform_indices = @transform_0, window_bounds = array<i64: 1, 8, 32>}, {transform_indices = @transform_1, window_bounds = array<i64: 1, 8, 32>}, {transform_indices = @transform_2, window_bounds = array<i64: 1, 1, 32>}, {transform_indices = @transform_3, window_bounds = array<i64: 1>}, {transform_indices = @transform_4, window_bounds = array<i64: 1, 2, 8>}]} {
    %c0 = arith.constant 0 : index
    %0 = memref.load %arg5[%c0] : memref<1xf32, #tpu.memory_space<smem>>
    %c0_0 = arith.constant 0 : index
    %c0_1 = arith.constant 0 : index
    %c0_2 = arith.constant 0 : index
    %1 = vector.load %arg4[%c0_0, %c0_1, %c0_2] : memref<1x1x32xf32, #tpu.memory_space<vmem>>, vector<1x1x32xf32>
    %2 = vector.shape_cast %1 : vector<1x1x32xf32> to vector<1x32xf32>
    %c0_3 = arith.constant 0 : index
    %c0_4 = arith.constant 0 : index
    %c0_5 = arith.constant 0 : index
    %3 = vector.load %arg2[%c0_3, %c0_4, %c0_5] : memref<1x8x32xf32, #tpu.memory_space<vmem>>, vector<1x8x32xf32>
    %4 = vector.shape_cast %3 : vector<1x8x32xf32> to vector<8x32xf32>
    %5 = vector.broadcast %2 : vector<1x32xf32> to vector<8x32xf32>
    %6 = arith.mulf %4, %5 : vector<8x32xf32>
    %cst = arith.constant dense<0.000000e+00> : vector<8xf32>
    %7 = vector.multi_reduction <add>, %6, %cst [1] : vector<8x32xf32> to vector<8xf32>
    %c0_6 = arith.constant 0 : index
    %c0_7 = arith.constant 0 : index
    %c0_8 = arith.constant 0 : index
    %8 = vector.load %arg3[%c0_6, %c0_7, %c0_8] : memref<1x8x32xf32, #tpu.memory_space<vmem>>, vector<1x8x32xf32>
    %9 = vector.shape_cast %8 : vector<1x8x32xf32> to vector<8x32xf32>
    %10 = vector.broadcast %2 : vector<1x32xf32> to vector<8x32xf32>
    %11 = arith.mulf %9, %10 : vector<8x32xf32>
    %cst_9 = arith.constant dense<0.000000e+00> : vector<8xf32>
    %12 = vector.multi_reduction <add>, %11, %cst_9 [1] : vector<8x32xf32> to vector<8xf32>
    %13 = vector.broadcast %0 : f32 to vector<8xf32>
    %14 = arith.addf %7, %13 : vector<8xf32>
    %c0_10 = arith.constant 0 : index
    %c0_11 = arith.constant 0 : index
    %c0_12 = arith.constant 0 : index
    %15 = vector.load %arg6[%c0_10, %c0_11, %c0_12] : memref<1x2x8xf32, #tpu.memory_space<vmem>>, vector<1x1x8xf32>
    %16 = vector.shape_cast %15 : vector<1x1x8xf32> to vector<8xf32>
    %17 = vector.shape_cast %14 : vector<8xf32> to vector<1x1x8xf32>
    tpu.vector_store %arg6[%c0_10, %c0_11, %c0_12], %17 {strides = array<i32>} : memref<1x2x8xf32, #tpu.memory_space<vmem>>, vector<1x1x8xf32>,
    %18 = vector.broadcast %0 : f32 to vector<8xf32>
    %19 = arith.addf %12, %18 : vector<8xf32>
    %c0_13 = arith.constant 0 : index
    %c1 = arith.constant 1 : index
    %c0_14 = arith.constant 0 : index
    %20 = vector.load %arg6[%c0_13, %c1, %c0_14] : memref<1x2x8xf32, #tpu.memory_space<vmem>>, vector<1x1x8xf32>
    %21 = vector.shape_cast %20 : vector<1x1x8xf32> to vector<8xf32>
    %22 = vector.shape_cast %19 : vector<8xf32> to vector<1x1x8xf32>
    tpu.vector_store %arg6[%c0_13, %c1, %c0_14], %22 {strides = array<i32>} : memref<1x2x8xf32, #tpu.memory_space<vmem>>, vector<1x1x8xf32>,
    return
  }
  func.func @transform_0(%arg0: i32, %arg1: i32) -> (i32, i32, i32) {
    %c0_i32 = arith.constant 0 : i32
    %c0_i32_0 = arith.constant 0 : i32
    return %arg0, %arg1, %c0_i32 : i32, i32, i32
  }
  func.func @transform_1(%arg0: i32, %arg1: i32) -> (i32, i32, i32) {
    %c0_i32 = arith.constant 0 : i32
    %c0_i32_0 = arith.constant 0 : i32
    return %arg0, %arg1, %c0_i32 : i32, i32, i32
  }
  func.func @transform_2(%arg0: i32, %arg1: i32) -> (i32, i32, i32) {
    %c0_i32 = arith.constant 0 : i32
    %c0_i32_0 = arith.constant 0 : i32
    %c0_i32_1 = arith.constant 0 : i32
    return %arg0, %c0_i32, %c0_i32_0 : i32, i32, i32
  }
  func.func @transform_3(%arg0: i32, %arg1: i32) -> i32 {
    %c0_i32 = arith.constant 0 : i32
    %c0_i32_0 = arith.constant 0 : i32
    return %c0_i32 : i32
  }
  func.func @transform_4(%arg0: i32, %arg1: i32) -> (i32, i32, i32) {
    %c0_i32 = arith.constant 0 : i32
    %c0_i32_0 = arith.constant 0 : i32
    return %arg0, %c0_i32, %arg1 : i32, i32, i32
  }
}

</mosaic_0001>

<llo_original>
// kernel: tpu_custom_call.1
$region0: #{tpu_custom_call.1}
  #allocation0 [shape = 'u32[]', space=smem, size = 0x4, offset = 0x4, fixed_abs, tag = 'smem constant byte address 0x4 - core index']
  #allocation1 [shape = 'u32[144,128]{1,0:T(1,128)}', space=vmem, size = 0x12000, scoped, tag = 'internal scratch']
  #allocation2 [shape = 'f32[1]{0:T(128)S(6)}', space=smem, size = 0x200, scoped, tag = 'scoped memory for tpu_custom_call.1']
  %s0 = inlined_call_operand.hbm [shape: f32[2,8,32], index: 0, kind: input, shape index: {}]
  %s1 = inlined_call_operand.hbm [shape: f32[2,8,32], index: 1, kind: input, shape index: {}]
  %s2 = inlined_call_operand.vmem [shape: f32[2,1,32], index: 2, kind: input, shape index: {}]
  %s3 = inlined_call_operand.<no memory space> [shape: f32[1], index: 3, kind: input, shape index: {}]
  %s4 = inlined_call_operand.hbm [shape: f32[2,2,8], index: 4, kind: output, shape index: {}]
  %s5 = sld [smem:[#allocation0]]
  $region57: #{tpu_custom_call.1} parent=0
    _
  %s7 = ssub.s32 1, %s5
  %s8 = scalar_select 0, %s7, %s5
  %9 = sst [smem:[#allocation2]] %s3
  $region1: #{tpu_custom_call.1} parent=0
    #allocation3 [shape = 'u8[8192]{0}', space=vmem, size = 0x2000, scoped, tag = 'input window, operand 0']
    #allocation4 [shape = 's32[2]{0}', space=sflag, size = 0x8, scoped, tag = 'scoped memory for tpu_custom_call.1']
    #allocation5 [shape = 's32[2]{0}', space=sflag, size = 0x8, scoped, tag = 'scoped memory for tpu_custom_call.1']
    #allocation6 [shape = 'u8[8192]{0}', space=vmem, size = 0x2000, scoped, tag = 'input window, operand 1']
    #allocation7 [shape = 's32[2]{0}', space=sflag, size = 0x8, scoped, tag = 'scoped memory for tpu_custom_call.1']
    #allocation8 [shape = 'u8[2048]{0}', space=vmem, size = 0x800, scoped, tag = 'output window, operand 0']
    %10 = vsyncpa [#allocation4], 0
    %s11 = scalar_lea.sflag [#allocation4], 1
    %12 = vsyncpa %s11, 0
    %13 = vsyncpa [#allocation7], 0
    %s14 = scalar_lea.sflag [#allocation7], 1
    %15 = vsyncpa %s14, 0
    %16 = vsyncpa [#allocation5], 0
    %s17 = scalar_lea.sflag [#allocation5], 1
    %18 = vsyncpa %s17, 0
    loop: start=0, step=1, limit=4
    $region2: #{tpu_custom_call.1} parent=1 // loop_pre_header
      _
    $region3: #{tpu_custom_call.1} parent=1 // loop_header
      %s20 = sphi 0, %s24
      %p21 = scmp.ge.s32.totalorder %s20, 4
      %s27 = sphi 0, %s39
      %s28 = sphi 0, %s35
      %s29 = sphi 0, %s27
      %s30 = sphi 0, %s28
      %s31 = sphi 0, %s29
      %s32 = sphi 0, %s30
      %s44 = sphi 0, %s46
      %s47 = sphi 0, %s44
      %s48 = sphi 0, %s47
      %s64 = sphi 0, %s48
      %s72 = sphi 0, %s74
      %s75 = sphi 0, %s72
      %s76 = sphi 0, %s75
      %s92 = sphi 0, %s76
      %s98 = sphi 0, %s100
      %s101 = sphi 0, %s98
      %s102 = sphi 0, %s101
      %s118 = sphi 0, %s102
      %s122 = sphi 0, %s122
      %s124 = sphi 0, %s122
      %s125 = sphi 0, %s124
      %s139 = sphi 0, %s125
      %s147 = sphi 0, %s149
      %s150 = sphi 0, %s147
      %s151 = sphi 0, %s150
      %s167 = sphi 0, %s151
    $region4: #{tpu_custom_call.1} parent=1 // loop_header_branch
      %23 = sbr.rel (%p21) target = $region8
    $region5: #{tpu_custom_call.1} parent=1 // loop_body
      %s25 = ssub.s32 %s20, 1
      %s26 = ssub.s32 %s20, 2
      %s33 = sadd.s32 1, %s28
      %p34 = scmp.ge.s32.totalorder %s33, 1
      %s35 = scalar_select %p34, 0, %s33
      %s36 = sadd.s32 1, %s27
      %s37 = scalar_select %p34, %s36, %s27
      %p38 = scmp.ge.s32.totalorder %s37, 2
      %s39 = scalar_select %p38, 0, %s37
      %s40 = ssub.s32 %s27, %s39
      %s41 = ssub.s32 %s28, %s35
      %s42 = sor.u32 %s40, %s41
      %p43 = scmp.eq.s32.totalorder %s42, 0
      %s45 = sadd.s32 %s44, 1
      %s46 = scalar_select %p43, %s44, %s45
      %p49 = pneg %p43
      %p50 = scmp.eq.s32.totalorder %s20, 1
      %p51 = por %p49, %p50
      %p52 = scmp.ne.s32.totalorder %s44, %s47
      %p53 = scmp.eq.s32.totalorder %s20, 0
      %p54 = por %p52, %p53
      %p55 = scmp.ne.s32.totalorder %s44, %s47
      %p56 = scmp.eq.s32.totalorder %s25, 1
      %p57 = por %p55, %p56
      %p58 = scmp.ne.s32.totalorder %s47, %s48
      %p59 = scmp.eq.s32.totalorder %s25, 0
      %p60 = por %p58, %p59
      %p61 = scmp.ne.s32.totalorder %s47, %s48
      %p62 = scmp.eq.s32.totalorder %s26, 1
      %p63 = por %p61, %p62
      %p65 = scmp.ne.s32.totalorder %s48, %s64
      %p66 = scmp.eq.s32.totalorder %s26, 0
      %p67 = por %p65, %p66
      %s68 = ssub.s32 %s27, %s39
      %s69 = ssub.s32 %s28, %s35
      %s70 = sor.u32 %s68, %s69
      %p71 = scmp.eq.s32.totalorder %s70, 0
      %s73 = sadd.s32 %s72, 1
      %s74 = scalar_select %p71, %s72, %s73
      %p77 = pneg %p71
      %p78 = scmp.eq.s32.totalorder %s20, 1
      %p79 = por %p77, %p78
      %p80 = scmp.ne.s32.totalorder %s72, %s75
      %p81 = scmp.eq.s32.totalorder %s20, 0
      %p82 = por %p80, %p81
      %p83 = scmp.ne.s32.totalorder %s72, %s75
      %p84 = scmp.eq.s32.totalorder %s25, 1
      %p85 = por %p83, %p84
      %p86 = scmp.ne.s32.totalorder %s75, %s76
      %p87 = scmp.eq.s32.totalorder %s25, 0
      %p88 = por %p86, %p87
      %p89 = scmp.ne.s32.totalorder %s75, %s76
      %p90 = scmp.eq.s32.totalorder %s26, 1
      %p91 = por %p89, %p90
      %p93 = scmp.ne.s32.totalorder %s76, %s92
      %p94 = scmp.eq.s32.totalorder %s26, 0
      %p95 = por %p93, %p94
      %s96 = ssub.s32 %s27, %s39
      %p97 = scmp.eq.s32.totalorder %s96, 0
      %s99 = sadd.s32 %s98, 1
      %s100 = scalar_select %p97, %s98, %s99
      %p103 = pneg %p97
      %p104 = scmp.eq.s32.totalorder %s20, 1
      %p105 = por %p103, %p104
      %p106 = scmp.ne.s32.totalorder %s98, %s101
      %p107 = scmp.eq.s32.totalorder %s20, 0
      %p108 = por %p106, %p107
      %p109 = scmp.ne.s32.totalorder %s98, %s101
      %p110 = scmp.eq.s32.totalorder %s25, 1
      %p111 = por %p109, %p110
      %p112 = scmp.ne.s32.totalorder %s101, %s102
      %p113 = scmp.eq.s32.totalorder %s25, 0
      %p114 = por %p112, %p113
      %p115 = scmp.ne.s32.totalorder %s101, %s102
      %p116 = scmp.eq.s32.totalorder %s26, 1
      %p117 = por %p115, %p116
      %p119 = scmp.ne.s32.totalorder %s102, %s118
      %p120 = scmp.eq.s32.totalorder %s26, 0
      %p121 = por %p119, %p120
      %s123 = sadd.s32 %s122, 1
      %p126 = scmp.eq.s32.totalorder %s20, 1
      %p127 = scmp.ne.s32.totalorder %s122, %s124
      %p128 = scmp.eq.s32.totalorder %s20, 0
      %p129 = por %p127, %p128
      %p130 = scmp.ne.s32.totalorder %s122, %s124
      %p131 = scmp.eq.s32.totalorder %s25, 1
      %p132 = por %p130, %p131
      %p133 = scmp.ne.s32.totalorder %s124, %s125
      %p134 = scmp.eq.s32.totalorder %s25, 0
      %p135 = por %p133, %p134
      %p136 = scmp.ne.s32.totalorder %s124, %s125
      %p137 = scmp.eq.s32.totalorder %s26, 1
      %p138 = por %p136, %p137
      %p140 = scmp.ne.s32.totalorder %s125, %s139
      %p141 = scmp.eq.s32.totalorder %s26, 0
      %p142 = por %p140, %p141
      %s143 = ssub.s32 %s27, %s39
      %s144 = ssub.s32 %s28, %s35
      %s145 = sor.u32 %s143, %s144
      %p146 = scmp.eq.s32.totalorder %s145, 0
      %s148 = sadd.s32 %s147, 1
      %s149 = scalar_select %p146, %s147, %s148
      %p152 = pneg %p146
      %p153 = scmp.eq.s32.totalorder %s20, 1
      %p154 = por %p152, %p153
      %p155 = scmp.ne.s32.totalorder %s147, %s150
      %p156 = scmp.eq.s32.totalorder %s20, 0
      %p157 = por %p155, %p156
      %p158 = scmp.ne.s32.totalorder %s147, %s150
      %p159 = scmp.eq.s32.totalorder %s25, 1
      %p160 = por %p158, %p159
      %p161 = scmp.ne.s32.totalorder %s150, %s151
      %p162 = scmp.eq.s32.totalorder %s25, 0
      %p163 = por %p161, %p162
      %p164 = scmp.ne.s32.totalorder %s150, %s151
      %p165 = scmp.eq.s32.totalorder %s26, 1
      %p166 = por %p164, %p165
      %p168 = scmp.ne.s32.totalorder %s151, %s167
      %p169 = scmp.eq.s32.totalorder %s26, 0
      %p170 = por %p168, %p169
      %p171 = scmp.le.s32.totalorder 1, %s20
      %p172 = scmp.lt.s32.totalorder %s20, 3
      %p173 = pnand %p171, %p172
      %p174 = pneg %p173
      // Predicated region
      $region9: #{tpu_custom_call.1} parent=5 // pred_check
        _
      $region10: #{tpu_custom_call.1} parent=5 // pred_check_branch
        %176 = sbr.rel (%p173) target = $region12
      $region11: #{tpu_custom_call.1} parent=5 // pred_region
        %s177 = ssub.s32 %s20, 1
        // Predicated region
        $region13: #{tpu_custom_call.1} parent=11 // pred_check
          %p178 = pneg %p135
        $region14: #{tpu_custom_call.1} parent=11 // pred_check_branch
          %180 = sbr.rel (%p178) target = $region16
        $region15: #{tpu_custom_call.1} parent=11 // pred_region
          _
        $region16: #{tpu_custom_call.1} parent=11 // pred_fallthru
          _
      $region12: #{tpu_custom_call.1} parent=5 // pred_fallthru
        _
      %p181 = scmp.lt.s32.totalorder %s20, 2
      // Predicated region
      $region17: #{tpu_custom_call.1} parent=5 // pred_check
        %p182 = pneg %p181
      $region18: #{tpu_custom_call.1} parent=5 // pred_check_branch
        %184 = sbr.rel (%p182) target = $region20
      $region19: #{tpu_custom_call.1} parent=5 // pred_region
        // Predicated region
        $region21: #{tpu_custom_call.1} parent=19 // pred_check
          %p185 = pneg %p54
        $region22: #{tpu_custom_call.1} parent=19 // pred_check_branch
          %187 = sbr.rel (%p185) target = $region24
        $region23: #{tpu_custom_call.1} parent=19 // pred_region
          %s188 = sand.u32 %s44, 1
          %s189 = scalar_lea.sflag [#allocation4], %s188
          %s190 = sand.u32 %s44, 1
          %s191 = smul.addr %s190, 8
          %s192 = scalar_lea.vmem [#allocation3], %s191
          %s194 = ssub.s32 128, 128
          %195 = vsyncadd %s189, %s194
          %s196 = sadd.s32 %s28, %s27
          %s197 = smul.addr %s196, 128
          %s198 = scalar_lea.hbm %s0, %s197
          %s200 = sshll.u32 %s192, 4
          %s201 = int_to_ptr.vmem [resolvable:$true] %s200
          %203 = dma.hbm_to_vmem [thread:$0]  %s198, 128, %s201, %s189
        $region24: #{tpu_custom_call.1} parent=19 // pred_fallthru
          _
        // Predicated region
        $region25: #{tpu_custom_call.1} parent=19 // pred_check
          %p204 = pneg %p82
        $region26: #{tpu_custom_call.1} parent=19 // pred_check_branch
          %206 = sbr.rel (%p204) target = $region28
        $region27: #{tpu_custom_call.1} parent=19 // pred_region
          %s207 = sand.u32 %s72, 1
          %s208 = scalar_lea.sflag [#allocation7], %s207
          %s209 = sand.u32 %s72, 1
          %s210 = smul.addr %s209, 8
          %s211 = scalar_lea.vmem [#allocation6], %s210
          %s213 = ssub.s32 128, 128
          %214 = vsyncadd %s208, %s213
          %s215 = sadd.s32 %s28, %s27
          %s216 = smul.addr %s215, 128
          %s217 = scalar_lea.hbm %s1, %s216
          %s219 = sshll.u32 %s211, 4
          %s220 = int_to_ptr.vmem [resolvable:$true] %s219
          %222 = dma.hbm_to_vmem [thread:$0]  %s217, 128, %s220, %s208
        $region28: #{tpu_custom_call.1} parent=19 // pred_fallthru
          _
        // Predicated region
        $region29: #{tpu_custom_call.1} parent=19 // pred_check
          %p223 = pneg %p108
        $region30: #{tpu_custom_call.1} parent=19 // pred_check_branch
          %225 = sbr.rel (%p223) target = $region32
        $region31: #{tpu_custom_call.1} parent=19 // pred_region
          %p226 = scmp.lt.s32.totalorder %s27, 1
          %s227 = scalar_select %p226, %s27, 1
          %s228 = scalar_lea.vmem %s2, %s227
        $region32: #{tpu_custom_call.1} parent=19 // pred_fallthru
          _
      $region20: #{tpu_custom_call.1} parent=5 // pred_fallthru
        _
      %p229 = scmp.le.s32.totalorder 1, %s20
      %p230 = scmp.lt.s32.totalorder %s20, 3
      %p231 = pnand %p229, %p230
      %p232 = pneg %p231
      // Predicated region
      $region33: #{tpu_custom_call.1} parent=5 // pred_check
        _
      $region34: #{tpu_custom_call.1} parent=5 // pred_check_branch
        %234 = sbr.rel (%p231) target = $region36
      $region35: #{tpu_custom_call.1} parent=5 // pred_region
        %s235 = ssub.s32 %s20, 1
        %s236 = sand.u32 %s47, 1
        %s237 = scalar_lea.sflag [#allocation4], %s236
        %s238 = sand.u32 %s47, 1
        %s239 = smul.addr %s238, 8
        %s240 = scalar_lea.vmem [#allocation3], %s239
        // Predicated region
        $region37: #{tpu_custom_call.1} parent=35 // pred_check
          %p241 = pneg %p60
        $region38: #{tpu_custom_call.1} parent=35 // pred_check_branch
          %243 = sbr.rel (%p241) target = $region40
        $region39: #{tpu_custom_call.1} parent=35 // pred_region
          %244 = dma.done %s237, 128
        $region40: #{tpu_custom_call.1} parent=35 // pred_fallthru
          _
        %s245 = sand.u32 %s75, 1
        %s246 = scalar_lea.sflag [#allocation7], %s245
        %s247 = sand.u32 %s75, 1
        %s248 = smul.addr %s247, 8
        %s249 = scalar_lea.vmem [#allocation6], %s248
        // Predicated region
        $region41: #{tpu_custom_call.1} parent=35 // pred_check
          %p250 = pneg %p88
        $region42: #{tpu_custom_call.1} parent=35 // pred_check_branch
          %252 = sbr.rel (%p250) target = $region44
        $region43: #{tpu_custom_call.1} parent=35 // pred_region
          %253 = dma.done %s246, 128
        $region44: #{tpu_custom_call.1} parent=35 // pred_fallthru
          _
        %s254 = sand.u32 %s47, 1
        %s255 = scalar_lea.sflag [#allocation4], %s254
        %s256 = sand.u32 %s47, 1
        %s257 = smul.addr %s256, 8
        %s258 = scalar_lea.vmem [#allocation3], %s257
        %p259 = pneg %p60
        %p260 = pneg %p57
        %s261 = sand.u32 %s75, 1
        %s262 = scalar_lea.sflag [#allocation7], %s261
        %s263 = sand.u32 %s75, 1
        %s264 = smul.addr %s263, 8
        %s265 = scalar_lea.vmem [#allocation6], %s264
        %p266 = pneg %p88
        %p267 = pneg %p85
        %p268 = scmp.lt.s32.totalorder %s29, 1
        %s269 = scalar_select %p268, %s29, 1
        %s270 = scalar_lea.vmem %s2, %s269
        %p271 = pneg %p114
        %p272 = pneg %p111
        %p273 = pneg %p135
        %p274 = pneg %p132
        %p275 = pneg %p163
        %p276 = pneg %p160
        %s277 = sand.u32 %s150, 1
        %s278 = scalar_lea.sflag [#allocation5], %s277
        %s279 = sand.u32 %s150, 1
        %s280 = smul.addr %s279, 2
        %s281 = scalar_lea.vmem [#allocation8], %s280
        %p282 = scmp.lt.s32.totalorder %s29, 1
        %s283 = scalar_select %p282, %s29, 1
        %s284 = scalar_lea.vmem %s2, %s283
        %s285 = sld [smem:[#allocation2]]
        %v286 = vld [vmem:[%s284] sm:$0x1]
        %v287 = vld [vmem:[%s240] sm:$0xff]
        %v289 = vlaneseq
        %v290 = vshrl.u32 %v289, 7
        %v291 = vsub.s32 0, %v290
        %v292 = vrot.slane %v286, %v291
        %v294 = vmul.f32 %v287, %v292
        %vm295 = vcmask 261120
        %v296 = vsel %vm295, %v294, 0.0
        %297 = vadd.xlane.f32.xlu0 %v296
        %v298 = vpop.xlane.xlu0 %297
        %v299 = vld [vmem:[%s249] sm:$0xff]
        %v300 = vmul.f32 %v299, %v292
        %v301 = vsel %vm295, %v300, 0.0
        %302 = vadd.xlane.f32.xlu0 %v301
        %v303 = vpop.xlane.xlu0 %302
        %v304 = vstv %s285
        %v305 = vadd.f32 %v298, %v304
        %v307 = vlaneseq
        %v308 = vand.u32 %v307, 127
        %v309 = vlaneseq
        %v310 = vshrl.u32 %v309, 7
        %v311 = vsub.s32 %v308, %v310
        %v312 = vrot.slane %v305, %v311
        %vm314 = vcmask 57344
        %315 = vst.msk [vmem:[%s281] sm:$0x1] %vm314, %v312
        %v316 = vadd.f32 %v303, %v304
        %v318 = vlaneseq
        %v319 = vshrl.u32 %v318, 7
        %v320 = vsub.s32 %v308, %v319
        %v321 = vrot.slane %v316, %v320
        %323 = vst.msk [vmem:[%s281 + $0x1] sm:$0x1] %vm314, %v321
        %s324 = sand.u32 %s150, 1
        %s325 = scalar_lea.sflag [#allocation5], %s324
        %s326 = sand.u32 %s150, 1
        %s327 = smul.addr %s326, 2
        %s328 = scalar_lea.vmem [#allocation8], %s327
        // Predicated region
        $region45: #{tpu_custom_call.1} parent=35 // pred_check
          %p329 = pneg %p160
        $region46: #{tpu_custom_call.1} parent=35 // pred_check_branch
          %331 = sbr.rel (%p329) target = $region48
        $region47: #{tpu_custom_call.1} parent=35 // pred_region
          %s333 = ssub.s32 32, 32
          %334 = vsyncadd %s325, %s333
          %s335 = sadd.s32 %s30, %s29
          %s336 = smul.addr %s335, 32
          %s337 = scalar_lea.hbm %s4, %s336
          %s339 = sshll.u32 %s328, 4
          %s340 = int_to_ptr.vmem [resolvable:$true] %s339
          %342 = dma.vmem_to_hbm [thread:$0]  %s340, 32, %s337, %s325
        $region48: #{tpu_custom_call.1} parent=35 // pred_fallthru
          _
      $region36: #{tpu_custom_call.1} parent=5 // pred_fallthru
        _
      %p343 = scmp.le.s32.totalorder 2, %s20
      // Predicated region
      $region49: #{tpu_custom_call.1} parent=5 // pred_check
        %p344 = pneg %p343
      $region50: #{tpu_custom_call.1} parent=5 // pred_check_branch
        %346 = sbr.rel (%p344) target = $region52
      $region51: #{tpu_custom_call.1} parent=5 // pred_region
        %s347 = ssub.s32 %s20, 2
        // Predicated region
        $region53: #{tpu_custom_call.1} parent=51 // pred_check
          %p348 = pneg %p166
        $region54: #{tpu_custom_call.1} parent=51 // pred_check_branch
          %350 = sbr.rel (%p348) target = $region56
        $region55: #{tpu_custom_call.1} parent=51 // pred_region
          %s351 = sand.u32 %s151, 1
          %s352 = scalar_lea.sflag [#allocation5], %s351
          %s353 = sand.u32 %s151, 1
          %s354 = smul.addr %s353, 2
          %s355 = scalar_lea.vmem [#allocation8], %s354
          %356 = dma.done %s352, 32
        $region56: #{tpu_custom_call.1} parent=51 // pred_fallthru
          _
      $region52: #{tpu_custom_call.1} parent=5 // pred_fallthru
        _
    $region6: #{tpu_custom_call.1} parent=1 // loop_footer
      %s24 = sadd.s32 1, %s20
    $region7: #{tpu_custom_call.1} parent=1 // loop_footer_branch
      %19 = sbr.rel target = $region3
    $region8: #{tpu_custom_call.1} parent=1 // loop_exit
      _
    %357 = vsyncpa [#allocation4], 1
    %s358 = scalar_lea.sflag [#allocation4], 1
    %359 = vsyncpa %s358, 1
    %360 = vsyncpa [#allocation7], 1
    %s361 = scalar_lea.sflag [#allocation7], 1
    %362 = vsyncpa %s361, 1
    %363 = vsyncpa [#allocation5], 1
    %s364 = scalar_lea.sflag [#allocation5], 1
    %365 = vsyncpa %s364, 1

</llo_original>
